<compile_context>
chip_gen: v7x
topology: tpu7x:2x2x1
jax: 0.10.0
libtpu: 0.0.40
codegen_flags: <defaults>
</compile_context>

<pallas_src>
import functools

import jax
import jax.numpy as jnp
from jax.experimental import pallas as pl
from jax.experimental.pallas import tpu as pltpu


# ----------------------------------------------------------------------------
# Kernels
# ----------------------------------------------------------------------------
def _rmsnorm_kernel(x_ref, w_ref, o_ref, *, eps, inv_dim, keep_torch_cast):
    """Plain path: x_ref is (tile_rows, dim), the whole last dim is one row."""
    # Compute the mean-of-squares straight off the ref so the full f32 copy of
    # the tile is not kept live across the reduction (vreg/VMEM pressure).
    xsq = jnp.square(x_ref[...].astype(jnp.float32))
    ms = jnp.sum(xsq, axis=-1, keepdims=True) * inv_dim
    inv = jax.lax.rsqrt(ms + eps)

    # Re-read the tile for the normalize/store step; VMEM reads are essentially
    # free here (3 vld slots/cycle, kernel is HBM-bandwidth bound).
    normed = x_ref[...].astype(jnp.float32) * inv
    if keep_torch_cast:
        # Bit-exact torch `.type_as(x)` down-cast for non-f32 inputs.
        normed = normed.astype(x_ref.dtype).astype(jnp.float32)

    o_ref[...] = (w_ref[...].astype(jnp.float32) * normed).astype(o_ref.dtype)


def _rmsnorm_folded_kernel(x_ref, w_ref, seg_ref, o_ref, *, eps, inv_dim,
                           keep_torch_cast):
    """Folded path: x_ref is (tile_rows, k*dim) with k logical rows per
    physical 128-lane row. seg_ref is a (k*dim, k*dim) block-diagonal ones
    matrix; xsq @ seg gives the per-segment sum of squares broadcast back
    across each segment's lanes (MXU work is free — kernel is HBM-bound)."""
    xsq = jnp.square(x_ref[...].astype(jnp.float32))
    ssq = jnp.dot(xsq, seg_ref[...], preferred_element_type=jnp.float32)
    inv = jax.lax.rsqrt(ssq * inv_dim + eps)

    normed = x_ref[...].astype(jnp.float32) * inv
    if keep_torch_cast:
        normed = normed.astype(x_ref.dtype).astype(jnp.float32)

    o_ref[...] = (w_ref[...].astype(jnp.float32) * normed).astype(o_ref.dtype)


# ----------------------------------------------------------------------------
# Tiling / VMEM heuristics
# ----------------------------------------------------------------------------
def _round_up(v, m):
    return ((v + m - 1) // m) * m


def _cdiv(a, b):
    return -(-a // b)


def _vmem_budget():
    """(tile budget bytes, scoped vmem limit bytes), generation-aware.
    v5e/v6e have 128 MiB of VMEM; v7x only 64 MiB per TensorCore."""
    cap = None
    try:
        cap = getattr(pltpu.get_tpu_info(), "vmem_capacity_bytes", None)
    except Exception:  # pragma: no cover - query not available
        cap = None
    if cap is not None and cap >= 100 * 1024 * 1024:      # v5e / v6e (128 MiB)
        return 32 * 1024 * 1024, 48 * 1024 * 1024
    return 24 * 1024 * 1024, 40 * 1024 * 1024             # v7x (64 MiB) / unknown


def _pick_tile_rows(n_rows, dim, in_itemsize, out_itemsize,
                    vmem_tile_budget_bytes, max_rows=512, min_steps=4):
    """Largest row tile (multiple of 8) whose working set fits the budget,
    capped so the grid keeps at least `min_steps` blocks when possible."""
    if n_rows <= 8:
        return n_rows  # full-extent block (array smaller than one sublane tile)

    # Double-buffered in/out DMA tiles + single-buffered f32 compute working
    # set (roughly two tile-sized f32 intermediates live at peak).
    bytes_per_row = 2 * dim * (in_itemsize + out_itemsize) + 8 * dim
    tr = vmem_tile_budget_bytes // max(bytes_per_row, 1)
    tr = int(min(tr, max_rows, _round_up(n_rows, 8)))
    tr = max(8, (tr // 8) * 8)

    # Guarantee >= min_steps grid blocks when the row count allows it, so the
    # "parallel" axis can shard across v7x's two TensorCores and the DMA
    # pipeline has iterations to overlap (per-step overhead is only ~0.35 us).
    min_steps_tr = max(8, _round_up(_cdiv(n_rows, min_steps), 8))
    return min(tr, min_steps_tr)


# ----------------------------------------------------------------------------
# Wrapper
# ----------------------------------------------------------------------------
def rmsnorm(x, weight, eps=1e-6, *, tile_rows=None, out_dtype=None):
    """RMSNorm over the last axis of x. weight has shape (dim,).

    out_dtype: optional override. Default follows torch promotion of
    (weight * norm.type_as(x)); pass x.dtype to keep bf16 activations bf16
    and halve the output write bytes (this op is pure HBM-bandwidth bound).
    """
    orig_shape = x.shape
    dim = orig_shape[-1]
    assert weight.shape == (dim,)

    if out_dtype is None:
        out_dtype = jnp.promote_types(weight.dtype, x.dtype)

    x2d = x.reshape(-1, dim)
    n_rows = x2d.shape[0]
    keep_torch_cast = jnp.dtype(x.dtype) != jnp.dtype(jnp.float32)

    # Lane-dense row folding for small dims: fold k = 128 // dim logical rows
    # into one 128-lane physical row so loads/stores are unmasked, full-width.
    fold = 1
    if dim < 128 and 128 % dim == 0 and n_rows % (128 // dim) == 0:
        fold = 128 // dim

    if fold > 1:
        dim_eff = fold * dim
        n_rows_eff = n_rows // fold
        x_in = x2d.reshape(n_rows_eff, dim_eff)
        w_in = jnp.tile(weight, fold).reshape(1, dim_eff)
        seg_ids = jnp.arange(dim_eff, dtype=jnp.int32) // dim
        seg = (seg_ids[:, None] == seg_ids[None, :]).astype(jnp.float32)
    else:
        dim_eff = dim
        n_rows_eff = n_rows
        x_in = x2d
        w_in = weight.reshape(1, dim)
        seg = None

    tile_budget, vmem_limit = _vmem_budget()
    if tile_rows is None:
        tr = _pick_tile_rows(
            n_rows_eff, dim_eff,
            jnp.dtype(x.dtype).itemsize, jnp.dtype(out_dtype).itemsize,
            tile_budget)
    else:
        tr = n_rows_eff if n_rows_eff <= 8 else max(8, (tile_rows // 8) * 8)

    grid = (pl.cdiv(n_rows_eff, tr),)  # ragged last block is fine: rows are independent

    cost = pl.CostEstimate(
        flops=4 * n_rows * dim,
        transcendentals=n_rows,
        bytes_accessed=x2d.size * jnp.dtype(x.dtype).itemsize
        + n_rows * dim * jnp.dtype(out_dtype).itemsize
        + weight.size * jnp.dtype(weight.dtype).itemsize,
    )

    if fold > 1:
        kernel = functools.partial(
            _rmsnorm_folded_kernel, eps=eps, inv_dim=1.0 / dim,
            keep_torch_cast=keep_torch_cast)
        in_specs = [
            pl.BlockSpec((tr, dim_eff), lambda i: (i, 0)),
            pl.BlockSpec((1, dim_eff), lambda i: (0, 0)),
            pl.BlockSpec((dim_eff, dim_eff), lambda i: (0, 0)),
        ]
        operands = (x_in, w_in, seg)
    else:
        kernel = functools.partial(
            _rmsnorm_kernel, eps=eps, inv_dim=1.0 / dim,
            keep_torch_cast=keep_torch_cast)
        in_specs = [
            pl.BlockSpec((tr, dim_eff), lambda i: (i, 0)),
            pl.BlockSpec((1, dim_eff), lambda i: (0, 0)),
        ]
        operands = (x_in, w_in)

    out = pl.pallas_call(
        kernel,
        out_shape=jax.ShapeDtypeStruct((n_rows_eff, dim_eff), out_dtype),
        grid=grid,
        in_specs=in_specs,
        out_specs=pl.BlockSpec((tr, dim_eff), lambda i: (i, 0)),
        compiler_params=pltpu.CompilerParams(
            dimension_semantics=("parallel",),
            vmem_limit_bytes=vmem_limit,
        ),
        cost_estimate=cost,
    )(*operands)

    return out.reshape(orig_shape)


def rmsnorm_reference(x, weight, eps=1e-6):
    xf = x.astype(jnp.float32)
    normed = xf * jax.lax.rsqrt(jnp.mean(xf * xf, axis=-1, keepdims=True) + eps)
    return weight * normed.astype(x.dtype)


if __name__ == "__main__":
    key = jax.random.PRNGKey(0)

    # Small shape matching the module (dim=32 exercises the lane-folded path).
    batch, seq, dim = 2, 8, 32
    x = jax.random.normal(key, (batch, seq, dim), dtype=jnp.float32)
    weight = jnp.ones((dim,), dtype=jnp.float32)   # nn.Parameter(torch.ones(dim))

    out = rmsnorm(x, weight, eps=1e-6)
    jax.block_until_ready(out)
    ref = rmsnorm_reference(x, weight, eps=1e-6)
    assert out.shape == x.shape
    assert jnp.allclose(out, ref, atol=1e-5, rtol=1e-5), "mismatch vs reference (folded path)"

    # Also exercise the plain (dim >= 128) path with a multi-block grid.
    key2 = jax.random.PRNGKey(0)
    x2 = jax.random.normal(key2, (2, 64, 256), dtype=jnp.float32)
    w2 = jnp.ones((256,), dtype=jnp.float32)
    out2 = rmsnorm(x2, w2, eps=1e-6)
    jax.block_until_ready(out2)
    ref2 = rmsnorm_reference(x2, w2, eps=1e-6)
    assert jnp.allclose(out2, ref2, atol=1e-5, rtol=1e-5), "mismatch vs reference (plain path)"

    print("KERNEL_OK")
</pallas_src>

<mosaic_0001>
module attributes {stable_mosaic.version = 11 : i64} {
  func.func @_rmsnorm_folded_kernel(%arg0: i32, %arg1: memref<4x128xf32, #tpu.memory_space<vmem>>, %arg2: memref<1x128xf32, #tpu.memory_space<vmem>>, %arg3: memref<128x128xf32, #tpu.memory_space<vmem>>, %arg4: memref<4x128xf32, #tpu.memory_space<vmem>>) attributes {dimension_semantics = [#tpu.dimension_semantics<parallel>], iteration_bounds = array<i64: 1>, scalar_prefetch = 0 : i64, scratch_operands = 0 : i64, tpu.core_type = #tpu.core_type<tc>, window_params = [{transform_indices = @transform_0, window_bounds = array<i64: 4, 128>}, {pipeline_mode = #tpu.pipeline_mode<synchronous>, transform_indices = @transform_1, window_bounds = array<i64: 1, 128>}, {pipeline_mode = #tpu.pipeline_mode<synchronous>, transform_indices = @transform_2, window_bounds = array<i64: 128, 128>}, {transform_indices = @transform_3, window_bounds = array<i64: 4, 128>}]} {
    %c0 = arith.constant 0 : index
    %c0_0 = arith.constant 0 : index
    %0 = vector.load %arg1[%c0, %c0_0] : memref<4x128xf32, #tpu.memory_space<vmem>>, vector<4x128xf32>
    %1 = arith.mulf %0, %0 : vector<4x128xf32>
    %c0_1 = arith.constant 0 : index
    %c0_2 = arith.constant 0 : index
    %2 = vector.load %arg3[%c0_1, %c0_2] : memref<128x128xf32, #tpu.memory_space<vmem>>, vector<128x128xf32>
    %cst = arith.constant dense<0.000000e+00> : vector<4x128xf32>
    %3 = tpu.matmul %1, %2, %cst {dimension_numbers = #tpu.dot_dimension_numbers<[1], [0], [0], [1], [0, 0, 1, 1], [], []>} : vector<4x128xf32>, vector<128x128xf32>, vector<4x128xf32> -> vector<4x128xf32>
    %cst_3 = arith.constant 3.125000e-02 : f32
    %4 = vector.broadcast %cst_3 : f32 to vector<4x128xf32>
    %5 = arith.mulf %3, %4 : vector<4x128xf32>
    %cst_4 = arith.constant 9.99999997E-7 : f32
    %6 = vector.broadcast %cst_4 : f32 to vector<4x128xf32>
    %7 = arith.addf %5, %6 : vector<4x128xf32>
    %8 = math.rsqrt %7 : vector<4x128xf32>
    %c0_5 = arith.constant 0 : index
    %c0_6 = arith.constant 0 : index
    %9 = vector.load %arg1[%c0_5, %c0_6] : memref<4x128xf32, #tpu.memory_space<vmem>>, vector<4x128xf32>
    %10 = arith.mulf %9, %8 : vector<4x128xf32>
    %c0_7 = arith.constant 0 : index
    %c0_8 = arith.constant 0 : index
    %11 = vector.load %arg2[%c0_7, %c0_8] : memref<1x128xf32, #tpu.memory_space<vmem>>, vector<1x128xf32>
    %12 = vector.broadcast %11 : vector<1x128xf32> to vector<4x128xf32>
    %13 = arith.mulf %12, %10 : vector<4x128xf32>
    %c0_9 = arith.constant 0 : index
    %c0_10 = arith.constant 0 : index
    %14 = vector.load %arg4[%c0_9, %c0_10] : memref<4x128xf32, #tpu.memory_space<vmem>>, vector<4x128xf32>
    tpu.vector_store %arg4[%c0_9, %c0_10], %13 {strides = array<i32>} : memref<4x128xf32, #tpu.memory_space<vmem>>, vector<4x128xf32>,
    return
  }
  func.func @transform_0(%arg0: i32) -> (i32, i32) {
    %c0_i32 = arith.constant 0 : i32
    %c0_i32_0 = arith.constant 0 : i32
    return %arg0, %c0_i32 : i32, i32
  }
  func.func @transform_1(%arg0: i32) -> (i32, i32) {
    %c0_i32 = arith.constant 0 : i32
    %c0_i32_0 = arith.constant 0 : i32
    %c0_i32_1 = arith.constant 0 : i32
    return %c0_i32, %c0_i32_0 : i32, i32
  }
  func.func @transform_2(%arg0: i32) -> (i32, i32) {
    %c0_i32 = arith.constant 0 : i32
    %c0_i32_0 = arith.constant 0 : i32
    %c0_i32_1 = arith.constant 0 : i32
    return %c0_i32, %c0_i32_0 : i32, i32
  }
  func.func @transform_3(%arg0: i32) -> (i32, i32) {
    %c0_i32 = arith.constant 0 : i32
    %c0_i32_0 = arith.constant 0 : i32
    return %arg0, %c0_i32 : i32, i32
  }
}

</mosaic_0001>

<llo_original>
// kernel: tpu_custom_call.1
$region0: #{tpu_custom_call.1}
  #allocation0 [shape = 'u32[]', space=smem, size = 0x4, offset = 0x4, fixed_abs, tag = 'smem constant byte address 0x4 - core index']
  #allocation1 [shape = 'u32[144,128]{1,0:T(1,128)}', space=vmem, size = 0x12000, scoped, tag = 'internal scratch']
  %s0 = inlined_call_operand.hbm [shape: f32[4,128], index: 0, kind: input, shape index: {}]
  %s1 = inlined_call_operand.vmem [shape: f32[1,128], index: 1, kind: input, shape index: {}]
  %s2 = inlined_call_operand.hbm [shape: f32[128,128], index: 2, kind: input, shape index: {}]
  %s3 = inlined_call_operand.hbm [shape: f32[4,128], index: 3, kind: output, shape index: {}]
  %s4 = sld [smem:[#allocation0]]
  $region30: #{tpu_custom_call.1} parent=0
    _
  %s6 = ssub.s32 1, %s4
  %s7 = scalar_select 0, %s6, %s4
  $region1: #{tpu_custom_call.1} parent=0
    #allocation2 [shape = 'u8[2048]{0}', space=vmem, size = 0x800, scoped, tag = 'input window, operand 0, single buffered']
    #allocation3 [shape = 's32[1]{0}', space=sflag, size = 0x4, scoped, tag = 'scoped memory for tpu_custom_call.1']
    #allocation4 [shape = 's32[1]{0}', space=sflag, size = 0x4, scoped, tag = 'scoped memory for tpu_custom_call.1']
    #allocation5 [shape = 'u8[65536]{0}', space=vmem, size = 0x10000, scoped, tag = 'input window, operand 2, single buffered']
    #allocation6 [shape = 's32[1]{0}', space=sflag, size = 0x4, scoped, tag = 'scoped memory for tpu_custom_call.1']
    #allocation7 [shape = 'u8[2048]{0}', space=vmem, size = 0x800, scoped, tag = 'output window, operand 0, single buffered']
    %8 = vsyncpa [#allocation3], 0
    %9 = vsyncpa [#allocation6], 0
    %10 = vsyncpa [#allocation4], 0
    // Predicated region
    $region2: #{tpu_custom_call.1} parent=1 // pred_check
      _
    $region3: #{tpu_custom_call.1} parent=1 // pred_check_branch
      %12 = sbr.rel (0) target = $region5
    $region4: #{tpu_custom_call.1} parent=1 // pred_region
      %s14 = ssub.s32 64, 64
      %15 = vsyncadd [#allocation3], %s14
      %s17 = sshll.u32 [#allocation2], 4
      %s18 = int_to_ptr.vmem [resolvable:$true] %s17
      %20 = dma.hbm_to_vmem [thread:$0]  %s0, 64, %s18, [#allocation3]
    $region5: #{tpu_custom_call.1} parent=1 // pred_fallthru
      _
    // Predicated region
    $region6: #{tpu_custom_call.1} parent=1 // pred_check
      _
    $region7: #{tpu_custom_call.1} parent=1 // pred_check_branch
      %22 = sbr.rel (0) target = $region9
    $region8: #{tpu_custom_call.1} parent=1 // pred_region
      _
    $region9: #{tpu_custom_call.1} parent=1 // pred_fallthru
      _
    // Predicated region
    $region10: #{tpu_custom_call.1} parent=1 // pred_check
      _
    $region11: #{tpu_custom_call.1} parent=1 // pred_check_branch
      %24 = sbr.rel (0) target = $region13
    $region12: #{tpu_custom_call.1} parent=1 // pred_region
      %s26 = ssub.s32 2048, 2048
      %27 = vsyncadd [#allocation6], %s26
      %s28 = sshll.u32 [#allocation5], 4
      %s29 = int_to_ptr.vmem [resolvable:$true] %s28
      %34 = dma.hbm_to_vmem [thread:$0]  %s2, 2048, %s29, [#allocation6], 128, 128, 8
    $region13: #{tpu_custom_call.1} parent=1 // pred_fallthru
      _
    // Predicated region
    $region14: #{tpu_custom_call.1} parent=1 // pred_check
      _
    $region15: #{tpu_custom_call.1} parent=1 // pred_check_branch
      %36 = sbr.rel (0) target = $region17
    $region16: #{tpu_custom_call.1} parent=1 // pred_region
      %37 = dma.done [#allocation3], 64
    $region17: #{tpu_custom_call.1} parent=1 // pred_fallthru
      _
    // Predicated region
    $region18: #{tpu_custom_call.1} parent=1 // pred_check
      _
    $region19: #{tpu_custom_call.1} parent=1 // pred_check_branch
      %39 = sbr.rel (0) target = $region21
    $region20: #{tpu_custom_call.1} parent=1 // pred_region
      %40 = dma.done [#allocation6], 2048
    $region21: #{tpu_custom_call.1} parent=1 // pred_fallthru
      _
    %v41 = vld [vmem:[#allocation2] sm:$0xf]
    %v42 = vmul.f32 %v41, %v41
    %v43 = vld [vmem:[#allocation5] sm:$0xff]
    %v44 = vld [vmem:[#allocation5 + $0x8] sm:$0xff]
    %v45 = vld [vmem:[#allocation5 + $0x10] sm:$0xff]
    %v46 = vld [vmem:[#allocation5 + $0x18] sm:$0xff]
    %v47 = vld [vmem:[#allocation5 + $0x20] sm:$0xff]
    %v48 = vld [vmem:[#allocation5 + $0x28] sm:$0xff]
    %v49 = vld [vmem:[#allocation5 + $0x30] sm:$0xff]
    %v50 = vld [vmem:[#allocation5 + $0x38] sm:$0xff]
    %v51 = vld [vmem:[#allocation5 + $0x40] sm:$0xff]
    %v52 = vld [vmem:[#allocation5 + $0x48] sm:$0xff]
    %v53 = vld [vmem:[#allocation5 + $0x50] sm:$0xff]
    %v54 = vld [vmem:[#allocation5 + $0x58] sm:$0xff]
    %v55 = vld [vmem:[#allocation5 + $0x60] sm:$0xff]
    %v56 = vld [vmem:[#allocation5 + $0x68] sm:$0xff]
    %v57 = vld [vmem:[#allocation5 + $0x70] sm:$0xff]
    %v58 = vld [vmem:[#allocation5 + $0x78] sm:$0xff]
    %59 = vmatprep.subr.mxu0 0.0
    %60 = vmatpush1.msra.mxu0 %v43
    %61 = vmatprep.subr.mxu0 0.0
    %62 = vmatpush1.msra.mxu0 %v44
    %63 = vmatprep.subr.mxu0 0.0
    %64 = vmatpush1.msra.mxu0 %v45
    %65 = vmatprep.subr.mxu0 0.0
    %66 = vmatpush1.msra.mxu0 %v46
    %67 = vmatprep.subr.mxu0 0.0
    %68 = vmatpush1.msra.mxu0 %v47
    %69 = vmatprep.subr.mxu0 0.0
    %70 = vmatpush1.msra.mxu0 %v48
    %71 = vmatprep.subr.mxu0 0.0
    %72 = vmatpush1.msra.mxu0 %v49
    %73 = vmatprep.subr.mxu0 0.0
    %74 = vmatpush1.msra.mxu0 %v50
    %75 = vmatprep.subr.mxu0 0.0
    %76 = vmatpush1.msra.mxu0 %v51
    %77 = vmatprep.subr.mxu0 0.0
    %78 = vmatpush1.msra.mxu0 %v52
    %79 = vmatprep.subr.mxu0 0.0
    %80 = vmatpush1.msra.mxu0 %v53
    %81 = vmatprep.subr.mxu0 0.0
    %82 = vmatpush1.msra.mxu0 %v54
    %83 = vmatprep.subr.mxu0 0.0
    %84 = vmatpush1.msra.mxu0 %v55
    %85 = vmatprep.subr.mxu0 0.0
    %86 = vmatpush1.msra.mxu0 %v56
    %87 = vmatprep.subr.mxu0 0.0
    %88 = vmatpush1.msra.mxu0 %v57
    %89 = vmatprep.subr.mxu0 0.0
    %90 = vmatpush1.msra.mxu0 %v58
    %91 = vmatprep.subr.mxu0 0.0
    %92 = vmatpush1.msra.mxu0 0.0
    %93 = vmatprep.subr.mxu0 0.0
    %94 = vmatpush1.msra.mxu0 0.0
    %95 = vmatprep.subr.mxu0 0.0
    %96 = vmatpush1.msra.mxu0 0.0
    %97 = vmatprep.subr.mxu0 0.0
    %98 = vmatpush1.msra.mxu0 0.0
    %99 = vmatprep.subr.mxu0 0.0
    %100 = vmatpush1.msra.mxu0 0.0
    %101 = vmatprep.subr.mxu0 0.0
    %102 = vmatpush1.msra.mxu0 0.0
    %103 = vmatprep.subr.mxu0 0.0
    %104 = vmatpush1.msra.mxu0 0.0
    %105 = vmatprep.subr.mxu0 0.0
    %106 = vmatpush1.msra.mxu0 0.0
    %107 = vmatprep.subr.mxu0 0.0
    %108 = vmatpush1.msra.mxu0 0.0
    %109 = vmatprep.subr.mxu0 0.0
    %110 = vmatpush1.msra.mxu0 0.0
    %111 = vmatprep.subr.mxu0 0.0
    %112 = vmatpush1.msra.mxu0 0.0
    %113 = vmatprep.subr.mxu0 0.0
    %114 = vmatpush1.msra.mxu0 0.0
    %115 = vmatprep.subr.mxu0 0.0
    %116 = vmatpush1.msra.mxu0 0.0
    %117 = vmatprep.subr.mxu0 0.0
    %118 = vmatpush1.msra.mxu0 0.0
    %119 = vmatprep.subr.mxu0 0.0
    %120 = vmatpush1.msra.mxu0 0.0
    %121 = vmatprep.subr.mxu0 0.0
    %122 = vmatpush1.msra.mxu0 0.0
    %123 = vmatprep.mubr.f32.mxu0 0.0
    %124 = vmatmul.mubr.f32.gmra.mrb[0].mxu0 %v42
    %v125 = vpop.f32.mrb[0].mxu0
    %v126 = vadd.f32 0.0, %v125
    %v127 = vpop.f32.mrb[0].mxu0
    %128 = vdwg.mxu0
    %v129 = vmul.f32 %v126, 0.03125
    %v130 = vadd.f32 %v129, 1e-06
    %v131 = vrsqrt.pop %v130
    %v132 = vmul.f32 %v41, %v131
    %v133 = vld [vmem:[%s1] sm:$0x1]
    %v135 = vlaneseq
    %v136 = vshrl.u32 %v135, 7
    %v137 = vsub.s32 0, %v136
    %v138 = vrot.slane %v133, %v137
    %v140 = vmul.f32 %v138, %v132
    %141 = vst [vmem:[#allocation7] sm:$0xf] %v140
    // Predicated region
    $region22: #{tpu_custom_call.1} parent=1 // pred_check
      _
    $region23: #{tpu_custom_call.1} parent=1 // pred_check_branch
      %143 = sbr.rel (0) target = $region25
    $region24: #{tpu_custom_call.1} parent=1 // pred_region
      %s145 = ssub.s32 64, 64
      %146 = vsyncadd [#allocation4], %s145
      %s148 = sshll.u32 [#allocation7], 4
      %s149 = int_to_ptr.vmem [resolvable:$true] %s148
      %151 = dma.vmem_to_hbm [thread:$0]  %s149, 64, %s3, [#allocation4]
    $region25: #{tpu_custom_call.1} parent=1 // pred_fallthru
      _
    // Predicated region
    $region26: #{tpu_custom_call.1} parent=1 // pred_check
      _
    $region27: #{tpu_custom_call.1} parent=1 // pred_check_branch
      %153 = sbr.rel (0) target = $region29
    $region28: #{tpu_custom_call.1} parent=1 // pred_region
      %154 = dma.done [#allocation4], 64
    $region29: #{tpu_custom_call.1} parent=1 // pred_fallthru
      _
    %155 = vsyncpa [#allocation3], 1
    %156 = vsyncpa [#allocation6], 1
    %157 = vsyncpa [#allocation4], 1

</llo_original>
